<compile_context>
chip_gen: v5e
topology: v5e:2x2
jax: 0.10.0
libtpu: 0.0.40
codegen_flags: <defaults>
</compile_context>

<pallas_src>
import functools

import jax
import jax.numpy as jnp
from jax import lax
from jax.experimental import pallas as pl
from jax.experimental.pallas import tpu as pltpu

_LN_EPS = 1e-5  # PyTorch nn.LayerNorm default
_LANE = 128
_MIB = 1024 * 1024


# ----------------------------- kernels --------------------------------------


def _ln_kernel(x_ref, w_ref, b_ref, o_ref, *, dim):
    # x_ref / o_ref: (tile_rows, dim); w_ref / b_ref: (1, dim).
    # No padding lanes, so no mask is needed; f32 accumulation throughout.
    x = x_ref[...].astype(jnp.float32)
    inv_n = jnp.float32(1.0 / dim)
    mean = jnp.sum(x, axis=-1, keepdims=True) * inv_n
    xc = x - mean
    var = jnp.sum(xc * xc, axis=-1, keepdims=True) * inv_n  # centered (stable)
    inv = lax.rsqrt(var + _LN_EPS)
    w = w_ref[...].astype(jnp.float32)
    b = b_ref[...].astype(jnp.float32)
    o_ref[...] = (xc * inv * w + b).astype(o_ref.dtype)


def _ln_packed_kernel(x_ref, w_ref, b_ref, s_ref, o_ref, *, dim):
    # x_ref / o_ref: (tile_rows, G*dim) with G = 128 // dim logical rows packed
    # per physical 128-lane row.  s_ref: (G*dim, G*dim) block-diagonal 0/1
    # matrix with S[i, j] = 1 iff i and j fall in the same length-`dim`
    # segment, so x @ S broadcasts each segment's sum back onto its own lanes
    # (segmented reduce on the otherwise-idle MXU).
    x = x_ref[...].astype(jnp.float32)
    s = s_ref[...]
    inv_n = jnp.float32(1.0 / dim)
    mean = jnp.dot(x, s, preferred_element_type=jnp.float32) * inv_n
    xc = x - mean
    var = jnp.dot(xc * xc, s, preferred_element_type=jnp.float32) * inv_n
    inv = lax.rsqrt(var + _LN_EPS)
    w = w_ref[...].astype(jnp.float32)
    b = b_ref[...].astype(jnp.float32)
    o_ref[...] = (xc * inv * w + b).astype(o_ref.dtype)


# ----------------------------- tiling ----------------------------------------


def _pick_tiling(rows, dim, itemsize):
    """Row-tile size + scoped-VMEM limit for a [rows, dim] slab."""
    # Sub-32-bit dtypes pack along sublanes: keep tile_rows a multiple of the
    # packed sublane count (8 f32, 16 bf16, 32 int8/fp8).
    pack = max(8, 32 // max(1, int(itemsize)))
    vmem_cap = 64 * _MIB  # conservative fallback (v7x per-TC VMEM)
    try:
        vmem_cap = int(pltpu.get_tpu_info().vmem_capacity_bytes)
    except Exception:
        pass
    # ~2 MiB blocks already saturate the HBM roofline on all generations;
    # bigger blocks mostly inflate block-sized f32 temporaries (OOM/spill risk
    # on v7x's 64 MiB VMEM) and shrink the grid (worse pipelining / 2-TC balance).
    block_budget = 2 * _MIB
    if rows < pack:
        tile_rows = rows  # block extent == full array extent (legal)
    else:
        budget_rows = max(pack, (block_budget // (dim * 4)) // pack * pack)
        # Aim for >= 8 grid steps when rows allow (double-buffering per core and
        # an even split across v7x's two TensorCores).
        target_rows = max(pack, pl.cdiv(pl.cdiv(rows, 8), pack) * pack)
        tile_rows = min(budget_rows, target_rows, pl.cdiv(rows, pack) * pack)
    # Scoped VMEM from actual usage: double-buffered in/out blocks plus a
    # handful of block-sized f32 temporaries, with compiler-scratch headroom.
    blk_io = tile_rows * dim * itemsize
    blk_f32 = tile_rows * dim * 4
    vmem_limit = 4 * blk_io + 8 * blk_f32 + 4 * _MIB
    vmem_limit = int(min(max(vmem_limit, 8 * _MIB), (3 * vmem_cap) // 4))
    return int(tile_rows), vmem_limit


# ----------------------------- pallas calls -----------------------------------


def _layernorm_plain(x2d, w2d, b2d, *, dim, tile_rows, vmem_limit_bytes):
    rows = x2d.shape[0]
    grid = (pl.cdiv(rows, tile_rows),)  # ragged last block handled by Pallas
    kernel = functools.partial(_ln_kernel, dim=dim)
    return pl.pallas_call(
        kernel,
        out_shape=jax.ShapeDtypeStruct((rows, dim), x2d.dtype),
        grid_spec=pltpu.PrefetchScalarGridSpec(
            num_scalar_prefetch=0,
            grid=grid,
            in_specs=[
                pl.BlockSpec((tile_rows, dim), lambda i: (i, 0)),
                pl.BlockSpec((1, dim), lambda i: (0, 0)),
                pl.BlockSpec((1, dim), lambda i: (0, 0)),
            ],
            out_specs=pl.BlockSpec((tile_rows, dim), lambda i: (i, 0)),
        ),
        compiler_params=pltpu.CompilerParams(
            dimension_semantics=("parallel",),
            vmem_limit_bytes=int(vmem_limit_bytes),
        ),
    )(x2d, w2d, b2d)


def _layernorm_packed(xp, wp, bp, seg, *, dim, tile_rows, vmem_limit_bytes):
    rows, gd = xp.shape
    grid = (pl.cdiv(rows, tile_rows),)
    kernel = functools.partial(_ln_packed_kernel, dim=dim)
    return pl.pallas_call(
        kernel,
        out_shape=jax.ShapeDtypeStruct((rows, gd), xp.dtype),
        grid_spec=pltpu.PrefetchScalarGridSpec(
            num_scalar_prefetch=0,
            grid=grid,
            in_specs=[
                pl.BlockSpec((tile_rows, gd), lambda i: (i, 0)),
                pl.BlockSpec((1, gd), lambda i: (0, 0)),
                pl.BlockSpec((1, gd), lambda i: (0, 0)),
                pl.BlockSpec((gd, gd), lambda i: (0, 0)),  # resident, 64 KiB
            ],
            out_specs=pl.BlockSpec((tile_rows, gd), lambda i: (i, 0)),
        ),
        compiler_params=pltpu.CompilerParams(
            dimension_semantics=("parallel",),
            vmem_limit_bytes=int(vmem_limit_bytes),
        ),
    )(xp, wp, bp, seg)


# ----------------------------- jitted forward ---------------------------------


@functools.partial(
    jax.jit, static_argnames=("dim", "group", "tile_rows", "vmem_limit_bytes")
)
def _dln_forward(x, weight, bias, idx, *, dim, group, tile_rows, vmem_limit_bytes):
    if idx is not None:
        # index_select on weight/bias is parameter glue — fused under this jit.
        w = jnp.take(weight, idx, axis=0)
        b = jnp.take(bias, idx, axis=0)
    else:
        w, b = weight, bias
    lead_shape = x.shape[:-1]
    x2d = x.reshape(-1, dim)
    rows = x2d.shape[0]
    if group > 1:
        gd = group * dim
        xp = x2d.reshape(rows // group, gd)  # free contiguous reshape
        wt = jnp.tile(w, group).reshape(1, gd)
        bt = jnp.tile(b, group).reshape(1, gd)
        i = lax.broadcasted_iota(jnp.int32, (gd, gd), 0) // dim
        j = lax.broadcasted_iota(jnp.int32, (gd, gd), 1) // dim
        seg = (i == j).astype(jnp.float32)
        y2d = _layernorm_packed(
            xp, wt, bt, seg,
            dim=dim, tile_rows=tile_rows, vmem_limit_bytes=vmem_limit_bytes,
        ).reshape(rows, dim)
    else:
        y2d = _layernorm_plain(
            x2d, w.reshape(1, dim), b.reshape(1, dim),
            dim=dim, tile_rows=tile_rows, vmem_limit_bytes=vmem_limit_bytes,
        )
    return y2d.reshape(*lead_shape, dim)


# ----------------------------- module -----------------------------------------


class DynamicLayerNorm:
    """JAX/Pallas port of the PyTorch DynamicLayerNorm module (forward only)."""

    def __init__(self, dim_in, dim_mask=None, key=None):
        self.dim_in = dim_in
        if key is None:
            # PyTorch nn.LayerNorm default init: weight=1, bias=0.
            self.weight = jnp.ones((dim_in,), jnp.float32)
            self.bias = jnp.zeros((dim_in,), jnp.float32)
        else:
            kw, kb = jax.random.split(key)
            self.weight = 1.0 + 0.1 * jax.random.normal(kw, (dim_in,), jnp.float32)
            self.bias = 0.1 * jax.random.normal(kb, (dim_in,), jnp.float32)

    def __call__(self, x, active_mask=(None,)):
        if active_mask[0] is not None:
            idx = jnp.asarray(active_mask, dtype=jnp.int32)
            dim = int(len(active_mask))
        else:
            idx = None
            dim = self.dim_in
        assert x.shape[-1] == dim, "last dim of x must match normalized dim"

        rows = 1
        for s in x.shape[:-1]:
            rows *= int(s)

        # Pack G = 128 // dim logical rows per physical 128-lane row when the
        # normalized dim is tiny and the packing divides evenly (lane-dense
        # loads/stores at 1x traffic; MXU does the segmented reduction).
        group = 1
        if 0 < dim <= 64 and _LANE % dim == 0:
            g = _LANE // dim
            if rows >= g and rows % g == 0:
                group = g

        tile_rows, vmem_limit = _pick_tiling(
            rows // group, dim * group, x.dtype.itemsize
        )
        # NOTE: on a ragged last row-block the kernel computes rsqrt on stale
        # VMEM rows before the masked writeback drops them — harmless.
        return _dln_forward(
            x, self.weight, self.bias, idx,
            dim=dim, group=group, tile_rows=tile_rows,
            vmem_limit_bytes=vmem_limit,
        )


# ----------------------------- reference & demo --------------------------------


def _reference_layernorm(x, w, b):
    x32 = x.astype(jnp.float32)
    mean = jnp.mean(x32, axis=-1, keepdims=True)
    var = jnp.mean((x32 - mean) ** 2, axis=-1, keepdims=True)
    return ((x32 - mean) / jnp.sqrt(var + _LN_EPS) * w + b).astype(x.dtype)


if __name__ == "__main__":
    key = jax.random.PRNGKey(0)
    k_param, k_x, k_xm = jax.random.split(key, 3)

    batch, seq, hidden = 2, 8, 32
    ln = DynamicLayerNorm(hidden, key=k_param)

    # Path 1: no active_mask (dim=32 -> packed kernel, G=4).
    x = jax.random.normal(k_x, (batch, seq, hidden), jnp.float32)
    y = jax.block_until_ready(ln(x))
    y_ref = _reference_layernorm(x, ln.weight, ln.bias)
    assert jnp.allclose(y, y_ref, atol=1e-5, rtol=1e-5)

    # Path 2: active_mask selects 16 of 32 channels (dim=16 -> packed kernel, G=8).
    active_mask = tuple(range(0, hidden, 2))  # length 16
    xm = jax.random.normal(k_xm, (batch, seq, len(active_mask)), jnp.float32)
    ym = jax.block_until_ready(ln(xm, active_mask=active_mask))
    idx = jnp.asarray(active_mask, dtype=jnp.int32)
    ym_ref = _reference_layernorm(
        xm, jnp.take(ln.weight, idx), jnp.take(ln.bias, idx)
    )
    assert jnp.allclose(ym, ym_ref, atol=1e-5, rtol=1e-5)

    # Path 3: plain kernel (dim=192, rows=21 -> ragged last row block).
    hidden2 = 192
    ln2 = DynamicLayerNorm(hidden2, key=k_param)
    x2 = jax.random.normal(k_x, (3, 7, hidden2), jnp.float32)
    y2 = jax.block_until_ready(ln2(x2))
    y2_ref = _reference_layernorm(x2, ln2.weight, ln2.bias)
    assert jnp.allclose(y2, y2_ref, atol=1e-5, rtol=1e-5)

    print("KERNEL_OK")
</pallas_src>

<mosaic_0001>
module attributes {stable_mosaic.version = 11 : i64} {
  func.func @_ln_packed_kernel(%arg0: i32, %arg1: memref<4x128xf32, #tpu.memory_space<vmem>>, %arg2: memref<1x128xf32, #tpu.memory_space<vmem>>, %arg3: memref<1x128xf32, #tpu.memory_space<vmem>>, %arg4: memref<128x128xf32, #tpu.memory_space<vmem>>, %arg5: memref<4x128xf32, #tpu.memory_space<vmem>>) attributes {dimension_semantics = [#tpu.dimension_semantics<parallel>], iteration_bounds = array<i64: 1>, scalar_prefetch = 0 : i64, scratch_operands = 0 : i64, tpu.core_type = #tpu.core_type<tc>, window_params = [{transform_indices = @transform_0, window_bounds = array<i64: 4, 128>}, {pipeline_mode = #tpu.pipeline_mode<synchronous>, transform_indices = @transform_1, window_bounds = array<i64: 1, 128>}, {pipeline_mode = #tpu.pipeline_mode<synchronous>, transform_indices = @transform_2, window_bounds = array<i64: 1, 128>}, {pipeline_mode = #tpu.pipeline_mode<synchronous>, transform_indices = @transform_3, window_bounds = array<i64: 128, 128>}, {transform_indices = @transform_4, window_bounds = array<i64: 4, 128>}]} {
    %c0 = arith.constant 0 : index
    %c0_0 = arith.constant 0 : index
    %0 = vector.load %arg1[%c0, %c0_0] : memref<4x128xf32, #tpu.memory_space<vmem>>, vector<4x128xf32>
    %c0_1 = arith.constant 0 : index
    %c0_2 = arith.constant 0 : index
    %1 = vector.load %arg4[%c0_1, %c0_2] : memref<128x128xf32, #tpu.memory_space<vmem>>, vector<128x128xf32>
    %cst = arith.constant dense<0.000000e+00> : vector<4x128xf32>
    %2 = tpu.matmul %0, %1, %cst {dimension_numbers = #tpu.dot_dimension_numbers<[1], [0], [0], [1], [0, 0, 1, 1], [], []>} : vector<4x128xf32>, vector<128x128xf32>, vector<4x128xf32> -> vector<4x128xf32>
    %cst_3 = arith.constant 3.125000e-02 : f32
    %3 = vector.broadcast %cst_3 : f32 to vector<4x128xf32>
    %4 = arith.mulf %2, %3 : vector<4x128xf32>
    %5 = arith.subf %0, %4 : vector<4x128xf32>
    %6 = arith.mulf %5, %5 : vector<4x128xf32>
    %cst_4 = arith.constant dense<0.000000e+00> : vector<4x128xf32>
    %7 = tpu.matmul %6, %1, %cst_4 {dimension_numbers = #tpu.dot_dimension_numbers<[1], [0], [0], [1], [0, 0, 1, 1], [], []>} : vector<4x128xf32>, vector<128x128xf32>, vector<4x128xf32> -> vector<4x128xf32>
    %cst_5 = arith.constant 3.125000e-02 : f32
    %8 = vector.broadcast %cst_5 : f32 to vector<4x128xf32>
    %9 = arith.mulf %7, %8 : vector<4x128xf32>
    %cst_6 = arith.constant 9.99999974E-6 : f32
    %10 = vector.broadcast %cst_6 : f32 to vector<4x128xf32>
    %11 = arith.addf %9, %10 : vector<4x128xf32>
    %12 = math.rsqrt %11 : vector<4x128xf32>
    %c0_7 = arith.constant 0 : index
    %c0_8 = arith.constant 0 : index
    %13 = vector.load %arg2[%c0_7, %c0_8] : memref<1x128xf32, #tpu.memory_space<vmem>>, vector<1x128xf32>
    %c0_9 = arith.constant 0 : index
    %c0_10 = arith.constant 0 : index
    %14 = vector.load %arg3[%c0_9, %c0_10] : memref<1x128xf32, #tpu.memory_space<vmem>>, vector<1x128xf32>
    %15 = arith.mulf %5, %12 : vector<4x128xf32>
    %16 = vector.broadcast %13 : vector<1x128xf32> to vector<4x128xf32>
    %17 = arith.mulf %15, %16 : vector<4x128xf32>
    %18 = vector.broadcast %14 : vector<1x128xf32> to vector<4x128xf32>
    %19 = arith.addf %17, %18 : vector<4x128xf32>
    %c0_11 = arith.constant 0 : index
    %c0_12 = arith.constant 0 : index
    %20 = vector.load %arg5[%c0_11, %c0_12] : memref<4x128xf32, #tpu.memory_space<vmem>>, vector<4x128xf32>
    tpu.vector_store %arg5[%c0_11, %c0_12], %19 {strides = array<i32>} : memref<4x128xf32, #tpu.memory_space<vmem>>, vector<4x128xf32>,
    return
  }
  func.func @transform_0(%arg0: i32) -> (i32, i32) {
    %c0_i32 = arith.constant 0 : i32
    %c0_i32_0 = arith.constant 0 : i32
    return %arg0, %c0_i32 : i32, i32
  }
  func.func @transform_1(%arg0: i32) -> (i32, i32) {
    %c0_i32 = arith.constant 0 : i32
    %c0_i32_0 = arith.constant 0 : i32
    %c0_i32_1 = arith.constant 0 : i32
    return %c0_i32, %c0_i32_0 : i32, i32
  }
  func.func @transform_2(%arg0: i32) -> (i32, i32) {
    %c0_i32 = arith.constant 0 : i32
    %c0_i32_0 = arith.constant 0 : i32
    %c0_i32_1 = arith.constant 0 : i32
    return %c0_i32, %c0_i32_0 : i32, i32
  }
  func.func @transform_3(%arg0: i32) -> (i32, i32) {
    %c0_i32 = arith.constant 0 : i32
    %c0_i32_0 = arith.constant 0 : i32
    %c0_i32_1 = arith.constant 0 : i32
    return %c0_i32, %c0_i32_0 : i32, i32
  }
  func.func @transform_4(%arg0: i32) -> (i32, i32) {
    %c0_i32 = arith.constant 0 : i32
    %c0_i32_0 = arith.constant 0 : i32
    return %arg0, %c0_i32 : i32, i32
  }
}

</mosaic_0001>

<llo_original>
// kernel: tile.14
$region0: #{tile.14}
  %s0 = inlined_call_operand.vmem [shape: f32[4,32], index: 0, kind: input, shape index: {}]
  %s1 = inlined_call_operand.vmem [shape: f32[1,128], index: 1, kind: output, shape index: {}]
  $region1: #{tile.14} parent=0
    #allocation0 [shape = 'u8[4096]{0}', space=vmem, size = 0x1000, scoped, tag = 'scoped mem for output reshape']
    #allocation1 [shape = 'u8[4096]{0}', space=vmem, size = 0x1000, scoped, tag = 'scoped mem for input reshape']
    %s3 = ssub.s32 16, 1
    %v4 = vld [vmem:[%s0] sm:%s3]
    %5 = vst [vmem:[#allocation1] sm:%s3] %v4
    %v6 = vld [vmem:[#allocation1] sm:$0x1]
    %vm7 = vcmask 261120
    %8 = vst.msk [vmem:[#allocation0] sm:$0x1] %vm7, %v6
    %s9 = scalar_lea.vmem [#allocation1], 3
    %v10 = vld [vmem:[%s9] sm:$0x1]
    %11 = vrot.lane.b32.xlu0 %v10, 96
    %v12 = vpop.permute.xlu0 %11
    %vm13 = vcmask 1048320
    %14 = vst.msk [vmem:[#allocation0] sm:$0x1] %vm13, %v12
    %s15 = scalar_lea.vmem [#allocation1], 2
    %v16 = vld [vmem:[%s15] sm:$0x1]
    %17 = vrot.lane.b32.xlu0 %v16, 64
    %v18 = vpop.permute.xlu0 %17
    %vm19 = vcmask 785920
    %20 = vst.msk [vmem:[#allocation0] sm:$0x1] %vm19, %v18
    %s21 = scalar_lea.vmem [#allocation1], 1
    %v22 = vld [vmem:[%s21] sm:$0x1]
    %23 = vrot.lane.b32.xlu0 %v22, 32
    %v24 = vpop.permute.xlu0 %23
    %vm25 = vcmask 523520
    %26 = vst.msk [vmem:[#allocation0] sm:$0x1] %vm25, %v24
    %s28 = ssub.s32 2, 1
    %v29 = vld [vmem:[#allocation0] sm:%s28]
    %s31 = ssub.s32 2, 1
    %32 = vst [vmem:[%s1] sm:%s31] %v29

// kernel: tile.13
$region0: #{tile.13}
  #allocation0 [shape = 's32[1]{0}', space=sflag, size = 0x4, scoped, tag = 'scoped memory for tile.13']
  %s0 = inlined_call_operand.vmem [shape: f32[32], index: 0, kind: input, shape index: {}]
  %s1 = inlined_call_operand.vmem [shape: f32[4,32], index: 1, kind: output, shape index: {}]
  // Predicated region
  $region2: #{tile.13} parent=0 // pred_check
    _
  $region3: #{tile.13} parent=0 // pred_check_branch
    %3 = sbr.rel (0) target = $region5
  $region4: #{tile.13} parent=0 // pred_region
    _
  $region5: #{tile.13} parent=0 // pred_fallthru
    _
  %v4 = vld [vmem:[%s0] ss:$0 sm:$0xff]
  %5 = vst [vmem:[%s1] sm:$0xf] %v4

// kernel: _dln_forward.1
$region0: #{_dln_forward.1}
  #allocation0 [shape = 'u32[]', space=smem, size = 0x4, offset = 0x4, fixed_abs, tag = 'smem constant byte address 0x4 - core index']
  #allocation1 [shape = 'u32[72,128]{1,0:T(1,128)}', space=vmem, size = 0x9000, scoped, tag = 'internal scratch']
  %s0 = inlined_call_operand.vmem [shape: f32[4,128], index: 0, kind: input, shape index: {}]
  %s1 = inlined_call_operand.vmem [shape: f32[1,128], index: 1, kind: input, shape index: {}]
  %s2 = inlined_call_operand.vmem [shape: f32[1,128], index: 2, kind: input, shape index: {}]
  %s3 = inlined_call_operand.vmem [shape: f32[128,128], index: 3, kind: input, shape index: {}]
  %s4 = inlined_call_operand.vmem [shape: f32[4,128], index: 4, kind: output, shape index: {}]
  %s5 = sld [smem:[#allocation0]]
  $region26: #{_dln_forward.1} parent=0
    _
  %s7 = ssub.s32 1, %s5
  %s8 = scalar_select 0, %s7, %s5
  // Predicated region
  $region2: #{_dln_forward.1} parent=0 // pred_check
    _
  $region3: #{_dln_forward.1} parent=0 // pred_check_branch
    %10 = sbr.rel (0) target = $region5
  $region4: #{_dln_forward.1} parent=0 // pred_region
    _
  $region5: #{_dln_forward.1} parent=0 // pred_fallthru
    _
  // Predicated region
  $region6: #{_dln_forward.1} parent=0 // pred_check
    _
  $region7: #{_dln_forward.1} parent=0 // pred_check_branch
    %12 = sbr.rel (0) target = $region9
  $region8: #{_dln_forward.1} parent=0 // pred_region
    _
  $region9: #{_dln_forward.1} parent=0 // pred_fallthru
    _
  // Predicated region
  $region10: #{_dln_forward.1} parent=0 // pred_check
    _
  $region11: #{_dln_forward.1} parent=0 // pred_check_branch
    %14 = sbr.rel (0) target = $region13
  $region12: #{_dln_forward.1} parent=0 // pred_region
    _
  $region13: #{_dln_forward.1} parent=0 // pred_fallthru
    _
  // Predicated region
  $region14: #{_dln_forward.1} parent=0 // pred_check
    _
  $region15: #{_dln_forward.1} parent=0 // pred_check_branch
    %16 = sbr.rel (0) target = $region17
  $region16: #{_dln_forward.1} parent=0 // pred_region
    _
  $region17: #{_dln_forward.1} parent=0 // pred_fallthru
    _
  %v17 = vld [vmem:[%s0] sm:$0xf]
  %v18 = vld [vmem:[%s3] sm:$0xff]
  %v19 = vld [vmem:[%s3 + $0x8] sm:$0xff]
  %v20 = vld [vmem:[%s3 + $0x10] sm:$0xff]
  %v21 = vld [vmem:[%s3 + $0x18] sm:$0xff]
  %v22 = vld [vmem:[%s3 + $0x20] sm:$0xff]
  %v23 = vld [vmem:[%s3 + $0x28] sm:$0xff]
  %v24 = vld [vmem:[%s3 + $0x30] sm:$0xff]
  %v25 = vld [vmem:[%s3 + $0x38] sm:$0xff]
  %v26 = vld [vmem:[%s3 + $0x40] sm:$0xff]
  %v27 = vld [vmem:[%s3 + $0x48] sm:$0xff]
  %v28 = vld [vmem:[%s3 + $0x50] sm:$0xff]
  %v29 = vld [vmem:[%s3 + $0x58] sm:$0xff]
  %v30 = vld [vmem:[%s3 + $0x60] sm:$0xff]
  %v31 = vld [vmem:[%s3 + $0x68] sm:$0xff]
  %v32 = vld [vmem:[%s3 + $0x70] sm:$0xff]
  %v33 = vld [vmem:[%s3 + $0x78] sm:$0xff]
  %34 = vmatpush.msra.mxu0 %v33
  %35 = vmatpush.msra.mxu0 %v32
  %36 = vmatpush.msra.mxu0 %v31
  %37 = vmatpush.msra.mxu0 %v30
  %38 = vmatpush.msra.mxu0 %v29
  %39 = vmatpush.msra.mxu0 %v28
  %40 = vmatpush.msra.mxu0 %v27
  %41 = vmatpush.msra.mxu0 %v26
  %42 = vmatpush.msra.mxu0 %v25
  %43 = vmatpush.msra.mxu0 %v24
  %44 = vmatpush.msra.mxu0 %v23
  %45 = vmatpush.msra.mxu0 %v22
  %46 = vmatpush.msra.mxu0 %v21
  %47 = vmatpush.msra.mxu0 %v20
  %48 = vmatpush.msra.mxu0 %v19
  %49 = vmatpush.msra.mxu0 %v18
  %50 = vmatmul.f32.gmra.mxu0 %v17
  %v51 = vpop.f32.mrf.mxu0
  %v52 = vadd.f32 0.0, %v51
  %53 = vdwg.mxu0
  %v54 = vmul.f32 %v52, 0.03125
  %v55 = vsub.f32 %v17, %v54
  %v56 = vmul.f32 %v55, %v55
  %57 = vmatpush.msra.mxu0 %v33
  %58 = vmatpush.msra.mxu0 %v32
  %59 = vmatpush.msra.mxu0 %v31
  %60 = vmatpush.msra.mxu0 %v30
  %61 = vmatpush.msra.mxu0 %v29
  %62 = vmatpush.msra.mxu0 %v28
  %63 = vmatpush.msra.mxu0 %v27
  %64 = vmatpush.msra.mxu0 %v26
  %65 = vmatpush.msra.mxu0 %v25
  %66 = vmatpush.msra.mxu0 %v24
  %67 = vmatpush.msra.mxu0 %v23
  %68 = vmatpush.msra.mxu0 %v22
  %69 = vmatpush.msra.mxu0 %v21
  %70 = vmatpush.msra.mxu0 %v20
  %71 = vmatpush.msra.mxu0 %v19
  %72 = vmatpush.msra.mxu0 %v18
  %73 = vmatmul.f32.gmra.mxu0 %v56
  %v74 = vpop.f32.mrf.mxu0
  %v75 = vadd.f32 0.0, %v74
  %76 = vdwg.mxu0
  %v77 = vmul.f32 %v75, 0.03125
  %v78 = vadd.f32 %v77, 1e-05
  %v79 = vrsqrt.pop %v78
  %v80 = vmul.f32 %v79, %v78
  %v81 = vmul.f32 %v80, %v79
  %v82 = vmul.f32 0.5, %v81
  %v83 = vsub.f32 1.5, %v82
  %v84 = vmul.f32 %v79, %v83
  %vm85 = vweird.f32 %v78
  %vm86 = vweird.f32 %v79
  %vm87 = vmor %vm85, %vm86
  %v88 = vsel %vm87, %v79, %v84
  %v89 = vld [vmem:[%s1] sm:$0x1]
  %v90 = vld [vmem:[%s2] sm:$0x1]
  %v91 = vmul.f32 %v55, %v88
  %v93 = vperm.slane %v89, 0
  %v95 = vmul.f32 %v91, %v93
  %v97 = vperm.slane %v90, 0
  %v99 = vadd.f32 %v95, %v97
  %100 = vst [vmem:[%s4] sm:$0xf] %v99
  // Predicated region
  $region18: #{_dln_forward.1} parent=0 // pred_check
    _
  $region19: #{_dln_forward.1} parent=0 // pred_check_branch
    %102 = sbr.rel (0) target = $region21
  $region20: #{_dln_forward.1} parent=0 // pred_region
    _
  $region21: #{_dln_forward.1} parent=0 // pred_fallthru
    _
  // Predicated region
  $region22: #{_dln_forward.1} parent=0 // pred_check
    _
  $region23: #{_dln_forward.1} parent=0 // pred_check_branch
    %104 = sbr.rel (0) target = $region25
  $region24: #{_dln_forward.1} parent=0 // pred_region
    _
  $region25: #{_dln_forward.1} parent=0 // pred_fallthru
    _

</llo_original>
